<compile_context>
chip_gen: v5e
topology: v5e:2x2
jax: 0.10.0
libtpu: 0.0.40
codegen_flags: <defaults>
</compile_context>

<pallas_src>
import functools
import math

import jax
import jax.numpy as jnp
from jax.experimental import pallas as pl
from jax.experimental.pallas import tpu as pltpu


# ----------------------------------------------------------------------------
# Fused kernel: LayerNorm(real plane) and LayerNorm(imag plane) in one pass.
#   x_ref : (2, block_rows, F) f32   -- [0] = real plane, [1] = imag plane
#   o_ref : (2, block_rows, F) f32
#   *_ref params : (1, F) f32, resident across all grid steps.
# ----------------------------------------------------------------------------
def _complex_norm_kernel(x_ref, rw_ref, rb_ref, cw_ref, cb_ref, o_ref, *, eps):
    def layernorm(v, w, b):
        mean = jnp.mean(v, axis=-1, keepdims=True)
        mean_sq = jnp.mean(v * v, axis=-1, keepdims=True)
        var = jnp.maximum(mean_sq - mean * mean, 0.0)   # biased var (PyTorch LN)
        inv = jax.lax.rsqrt(var + eps)                  # EUP slot, effectively free
        return (v - mean) * (inv * w) + b

    o_ref[0] = layernorm(x_ref[0], rw_ref[...], rb_ref[...]).astype(o_ref.dtype)
    o_ref[1] = layernorm(x_ref[1], cw_ref[...], cb_ref[...]).astype(o_ref.dtype)


def _round_up(x, m):
    return ((x + m - 1) // m) * m


def _vmem_info():
    """Returns (scoped vmem limit to request, per-step pipeline budget)."""
    try:
        cap = int(pltpu.get_tpu_info().vmem_capacity_bytes)
    except Exception:
        cap = 64 * 1024 * 1024            # conservative fallback (v7x per-core VMEM)
    limit = min(cap * 3 // 4, 96 * 1024 * 1024)
    budget = min(cap // 3, 40 * 1024 * 1024)
    return limit, budget


def _choose_block_rows(rows, F, budget_bytes):
    """Largest sublane-aligned row tile whose double-buffered pipeline footprint
    fits the VMEM budget; keeps >= 2 grid steps when rows allow so the
    "parallel" axis can be split across v7x's two TensorCores."""
    if rows <= 8:
        return rows                                    # single full-dim block (always legal)
    bytes_per_row = 2 * 2 * 2 * 4 * F                  # {in,out} x {re,im} x 2 buffers x f32
    cap = max(8, (budget_bytes // max(bytes_per_row, 1)) // 8 * 8)
    cap = min(cap, 2048)                               # diminishing returns beyond ~85% roofline
    block_rows = min(cap, (rows // 8) * 8)
    if rows >= 16:                                     # guarantee >= 2 grid steps
        block_rows = min(block_rows, _round_up(pl.cdiv(rows, 2), 8))
    return max(8, block_rows)


def complex_norm(x, params, *, eps=1e-5):
    """x: complex array (..., F). Returns rnorm(x.real) + 1j * cnorm(x.imag)."""
    orig_shape = x.shape
    F = orig_shape[-1]
    rows = math.prod(orig_shape[:-1])

    # Real/imag planes produced by ONE fused XLA op; reshapes of contiguous
    # data are free.  (complex128 inputs are downcast to f32 precision.)
    # TODO(synk): a zero-copy complex64 <-> interleaved-f32 view at the kernel
    # boundary would need lax.bitcast_convert_type on complex dtypes, which
    # JAX does not support; this stacked single-fusion boundary is the minimum
    # achievable traffic.
    xs = jnp.stack([jnp.real(x), jnp.imag(x)], axis=0).astype(jnp.float32)
    xs = xs.reshape(2, rows, F)

    rw = params["rnorm"]["weight"].reshape(1, F).astype(jnp.float32)
    rb = params["rnorm"]["bias"].reshape(1, F).astype(jnp.float32)
    cw = params["cnorm"]["weight"].reshape(1, F).astype(jnp.float32)
    cb = params["cnorm"]["bias"].reshape(1, F).astype(jnp.float32)

    vmem_limit, vmem_budget = _vmem_info()
    block_rows = _choose_block_rows(rows, F, vmem_budget)
    grid = (pl.cdiv(rows, block_rows),)   # ragged tail: reads padded, writes masked

    x_spec = pl.BlockSpec((2, block_rows, F), lambda i: (0, i, 0))
    p_spec = pl.BlockSpec((1, F), lambda i: (0, 0))    # params resident across steps

    # Note: when F % 128 != 0 (e.g. the small demo, F=32) stores are partially
    # masked vst.msk; packing several logical rows per 128-lane row would need
    # segmented lane reductions and is not worth it for this HBM-bound op.
    out = pl.pallas_call(
        functools.partial(_complex_norm_kernel, eps=eps),
        out_shape=jax.ShapeDtypeStruct((2, rows, F), jnp.float32),
        grid_spec=pltpu.PrefetchScalarGridSpec(
            num_scalar_prefetch=0,
            grid=grid,
            in_specs=[x_spec, p_spec, p_spec, p_spec, p_spec],
            out_specs=x_spec,
        ),
        compiler_params=pltpu.CompilerParams(
            dimension_semantics=("parallel",),
            vmem_limit_bytes=int(vmem_limit)),
    )(xs, rw, rb, cw, cb)

    re_out = out[0].reshape(orig_shape)
    im_out = out[1].reshape(orig_shape)
    return jax.lax.complex(re_out, im_out)


# ----------------------------------------------------------------------------
# Parameters (mirroring nn.LayerNorm weight/bias for rnorm and cnorm).
# ----------------------------------------------------------------------------
def init_complex_norm_params(key, num_features):
    kr_w, kr_b, kc_w, kc_b = jax.random.split(key, 4)
    # Non-trivial affine params so the test exercises the full path.
    return {
        "rnorm": {
            "weight": 1.0 + 0.1 * jax.random.normal(kr_w, (num_features,), jnp.float32),
            "bias": 0.1 * jax.random.normal(kr_b, (num_features,), jnp.float32),
        },
        "cnorm": {
            "weight": 1.0 + 0.1 * jax.random.normal(kc_w, (num_features,), jnp.float32),
            "bias": 0.1 * jax.random.normal(kc_b, (num_features,), jnp.float32),
        },
    }


# ----------------------------------------------------------------------------
# Pure-JAX reference (matches PyTorch LayerNorm semantics, eps=1e-5).
# ----------------------------------------------------------------------------
def complex_norm_ref(x, params, eps=1e-5):
    def ln(v, w, b):
        mean = jnp.mean(v, axis=-1, keepdims=True)
        var = jnp.mean((v - mean) ** 2, axis=-1, keepdims=True)
        return (v - mean) / jnp.sqrt(var + eps) * w + b

    re = ln(jnp.real(x).astype(jnp.float32),
            params["rnorm"]["weight"], params["rnorm"]["bias"])
    im = ln(jnp.imag(x).astype(jnp.float32),
            params["cnorm"]["weight"], params["cnorm"]["bias"])
    return jax.lax.complex(re, im)


if __name__ == "__main__":
    # Small shapes: batch=2, seq=8, num_features=32, complex input.
    B, S, Fdim = 2, 8, 32

    key = jax.random.PRNGKey(0)
    kr, ki, kp = jax.random.split(key, 3)
    x_re = jax.random.normal(kr, (B, S, Fdim), jnp.float32)
    x_im = jax.random.normal(ki, (B, S, Fdim), jnp.float32)
    x = jax.lax.complex(x_re, x_im)                  # complex64 (B, S, F)

    params = init_complex_norm_params(kp, Fdim)

    out = complex_norm(x, params)
    out = jax.block_until_ready(out)

    ref = jax.block_until_ready(complex_norm_ref(x, params))
    assert out.shape == (B, S, Fdim)
    assert out.dtype == jnp.complex64
    assert jnp.allclose(out, ref, atol=1e-5, rtol=1e-5), "mismatch vs reference"

    print("KERNEL_OK")
</pallas_src>

<mosaic_0001>
module attributes {stable_mosaic.version = 11 : i64} {
  func.func @_complex_norm_kernel(%arg0: i32, %arg1: memref<2x8x32xf32, #tpu.memory_space<vmem>>, %arg2: memref<1x32xf32, #tpu.memory_space<vmem>>, %arg3: memref<1x32xf32, #tpu.memory_space<vmem>>, %arg4: memref<1x32xf32, #tpu.memory_space<vmem>>, %arg5: memref<1x32xf32, #tpu.memory_space<vmem>>, %arg6: memref<2x8x32xf32, #tpu.memory_space<vmem>>) attributes {dimension_semantics = [#tpu.dimension_semantics<parallel>], iteration_bounds = array<i64: 2>, scalar_prefetch = 0 : i64, scratch_operands = 0 : i64, tpu.core_type = #tpu.core_type<tc>, window_params = [{transform_indices = @transform_0, window_bounds = array<i64: 2, 8, 32>}, {pipeline_mode = #tpu.pipeline_mode<synchronous>, transform_indices = @transform_1, window_bounds = array<i64: 1, 32>}, {pipeline_mode = #tpu.pipeline_mode<synchronous>, transform_indices = @transform_2, window_bounds = array<i64: 1, 32>}, {pipeline_mode = #tpu.pipeline_mode<synchronous>, transform_indices = @transform_3, window_bounds = array<i64: 1, 32>}, {pipeline_mode = #tpu.pipeline_mode<synchronous>, transform_indices = @transform_4, window_bounds = array<i64: 1, 32>}, {transform_indices = @transform_5, window_bounds = array<i64: 2, 8, 32>}]} {
    %c0 = arith.constant 0 : index
    %c0_0 = arith.constant 0 : index
    %c0_1 = arith.constant 0 : index
    %0 = vector.load %arg1[%c0, %c0_0, %c0_1] : memref<2x8x32xf32, #tpu.memory_space<vmem>>, vector<1x8x32xf32>
    %1 = vector.shape_cast %0 : vector<1x8x32xf32> to vector<8x32xf32>
    %c0_2 = arith.constant 0 : index
    %c0_3 = arith.constant 0 : index
    %2 = vector.load %arg2[%c0_2, %c0_3] : memref<1x32xf32, #tpu.memory_space<vmem>>, vector<1x32xf32>
    %c0_4 = arith.constant 0 : index
    %c0_5 = arith.constant 0 : index
    %3 = vector.load %arg3[%c0_4, %c0_5] : memref<1x32xf32, #tpu.memory_space<vmem>>, vector<1x32xf32>
    %cst = arith.constant dense<0.000000e+00> : vector<8xf32>
    %4 = vector.multi_reduction <add>, %1, %cst [1] : vector<8x32xf32> to vector<8xf32>
    %5 = vector.shape_cast %4 : vector<8xf32> to vector<8x1xf32>
    %cst_6 = arith.constant 3.200000e+01 : f32
    %6 = vector.broadcast %cst_6 : f32 to vector<8x1xf32>
    %7 = arith.divf %5, %6 : vector<8x1xf32>
    %8 = arith.mulf %1, %1 : vector<8x32xf32>
    %cst_7 = arith.constant dense<0.000000e+00> : vector<8xf32>
    %9 = vector.multi_reduction <add>, %8, %cst_7 [1] : vector<8x32xf32> to vector<8xf32>
    %10 = vector.shape_cast %9 : vector<8xf32> to vector<8x1xf32>
    %cst_8 = arith.constant 3.200000e+01 : f32
    %11 = vector.broadcast %cst_8 : f32 to vector<8x1xf32>
    %12 = arith.divf %10, %11 : vector<8x1xf32>
    %13 = arith.mulf %7, %7 : vector<8x1xf32>
    %14 = arith.subf %12, %13 : vector<8x1xf32>
    %cst_9 = arith.constant 0.000000e+00 : f32
    %15 = vector.broadcast %cst_9 : f32 to vector<8x1xf32>
    %16 = arith.maximumf %14, %15 : vector<8x1xf32>
    %cst_10 = arith.constant 9.99999974E-6 : f32
    %17 = vector.broadcast %cst_10 : f32 to vector<8x1xf32>
    %18 = arith.addf %16, %17 : vector<8x1xf32>
    %19 = math.rsqrt %18 : vector<8x1xf32>
    %20 = vector.broadcast %7 : vector<8x1xf32> to vector<8x32xf32>
    %21 = arith.subf %1, %20 : vector<8x32xf32>
    %22 = vector.broadcast %19 : vector<8x1xf32> to vector<8x32xf32>
    %23 = vector.broadcast %2 : vector<1x32xf32> to vector<8x32xf32>
    %24 = arith.mulf %22, %23 : vector<8x32xf32>
    %25 = arith.mulf %21, %24 : vector<8x32xf32>
    %26 = vector.broadcast %3 : vector<1x32xf32> to vector<8x32xf32>
    %27 = arith.addf %25, %26 : vector<8x32xf32>
    %c0_11 = arith.constant 0 : index
    %c0_12 = arith.constant 0 : index
    %c0_13 = arith.constant 0 : index
    %28 = vector.load %arg6[%c0_11, %c0_12, %c0_13] : memref<2x8x32xf32, #tpu.memory_space<vmem>>, vector<1x8x32xf32>
    %29 = vector.shape_cast %28 : vector<1x8x32xf32> to vector<8x32xf32>
    %30 = vector.shape_cast %27 : vector<8x32xf32> to vector<1x8x32xf32>
    tpu.vector_store %arg6[%c0_11, %c0_12, %c0_13], %30 {strides = array<i32>} : memref<2x8x32xf32, #tpu.memory_space<vmem>>, vector<1x8x32xf32>,
    %c1 = arith.constant 1 : index
    %c0_14 = arith.constant 0 : index
    %c0_15 = arith.constant 0 : index
    %31 = vector.load %arg1[%c1, %c0_14, %c0_15] : memref<2x8x32xf32, #tpu.memory_space<vmem>>, vector<1x8x32xf32>
    %32 = vector.shape_cast %31 : vector<1x8x32xf32> to vector<8x32xf32>
    %c0_16 = arith.constant 0 : index
    %c0_17 = arith.constant 0 : index
    %33 = vector.load %arg4[%c0_16, %c0_17] : memref<1x32xf32, #tpu.memory_space<vmem>>, vector<1x32xf32>
    %c0_18 = arith.constant 0 : index
    %c0_19 = arith.constant 0 : index
    %34 = vector.load %arg5[%c0_18, %c0_19] : memref<1x32xf32, #tpu.memory_space<vmem>>, vector<1x32xf32>
    %cst_20 = arith.constant dense<0.000000e+00> : vector<8xf32>
    %35 = vector.multi_reduction <add>, %32, %cst_20 [1] : vector<8x32xf32> to vector<8xf32>
    %36 = vector.shape_cast %35 : vector<8xf32> to vector<8x1xf32>
    %cst_21 = arith.constant 3.200000e+01 : f32
    %37 = vector.broadcast %cst_21 : f32 to vector<8x1xf32>
    %38 = arith.divf %36, %37 : vector<8x1xf32>
    %39 = arith.mulf %32, %32 : vector<8x32xf32>
    %cst_22 = arith.constant dense<0.000000e+00> : vector<8xf32>
    %40 = vector.multi_reduction <add>, %39, %cst_22 [1] : vector<8x32xf32> to vector<8xf32>
    %41 = vector.shape_cast %40 : vector<8xf32> to vector<8x1xf32>
    %cst_23 = arith.constant 3.200000e+01 : f32
    %42 = vector.broadcast %cst_23 : f32 to vector<8x1xf32>
    %43 = arith.divf %41, %42 : vector<8x1xf32>
    %44 = arith.mulf %38, %38 : vector<8x1xf32>
    %45 = arith.subf %43, %44 : vector<8x1xf32>
    %cst_24 = arith.constant 0.000000e+00 : f32
    %46 = vector.broadcast %cst_24 : f32 to vector<8x1xf32>
    %47 = arith.maximumf %45, %46 : vector<8x1xf32>
    %cst_25 = arith.constant 9.99999974E-6 : f32
    %48 = vector.broadcast %cst_25 : f32 to vector<8x1xf32>
    %49 = arith.addf %47, %48 : vector<8x1xf32>
    %50 = math.rsqrt %49 : vector<8x1xf32>
    %51 = vector.broadcast %38 : vector<8x1xf32> to vector<8x32xf32>
    %52 = arith.subf %32, %51 : vector<8x32xf32>
    %53 = vector.broadcast %50 : vector<8x1xf32> to vector<8x32xf32>
    %54 = vector.broadcast %33 : vector<1x32xf32> to vector<8x32xf32>
    %55 = arith.mulf %53, %54 : vector<8x32xf32>
    %56 = arith.mulf %52, %55 : vector<8x32xf32>
    %57 = vector.broadcast %34 : vector<1x32xf32> to vector<8x32xf32>
    %58 = arith.addf %56, %57 : vector<8x32xf32>
    %c1_26 = arith.constant 1 : index
    %c0_27 = arith.constant 0 : index
    %c0_28 = arith.constant 0 : index
    %59 = vector.load %arg6[%c1_26, %c0_27, %c0_28] : memref<2x8x32xf32, #tpu.memory_space<vmem>>, vector<1x8x32xf32>
    %60 = vector.shape_cast %59 : vector<1x8x32xf32> to vector<8x32xf32>
    %61 = vector.shape_cast %58 : vector<8x32xf32> to vector<1x8x32xf32>
    tpu.vector_store %arg6[%c1_26, %c0_27, %c0_28], %61 {strides = array<i32>} : memref<2x8x32xf32, #tpu.memory_space<vmem>>, vector<1x8x32xf32>,
    return
  }
  func.func @transform_0(%arg0: i32) -> (i32, i32, i32) {
    %c0_i32 = arith.constant 0 : i32
    %c0_i32_0 = arith.constant 0 : i32
    %c0_i32_1 = arith.constant 0 : i32
    return %c0_i32, %arg0, %c0_i32_0 : i32, i32, i32
  }
  func.func @transform_1(%arg0: i32) -> (i32, i32) {
    %c0_i32 = arith.constant 0 : i32
    %c0_i32_0 = arith.constant 0 : i32
    %c0_i32_1 = arith.constant 0 : i32
    return %c0_i32, %c0_i32_0 : i32, i32
  }
  func.func @transform_2(%arg0: i32) -> (i32, i32) {
    %c0_i32 = arith.constant 0 : i32
    %c0_i32_0 = arith.constant 0 : i32
    %c0_i32_1 = arith.constant 0 : i32
    return %c0_i32, %c0_i32_0 : i32, i32
  }
  func.func @transform_3(%arg0: i32) -> (i32, i32) {
    %c0_i32 = arith.constant 0 : i32
    %c0_i32_0 = arith.constant 0 : i32
    %c0_i32_1 = arith.constant 0 : i32
    return %c0_i32, %c0_i32_0 : i32, i32
  }
  func.func @transform_4(%arg0: i32) -> (i32, i32) {
    %c0_i32 = arith.constant 0 : i32
    %c0_i32_0 = arith.constant 0 : i32
    %c0_i32_1 = arith.constant 0 : i32
    return %c0_i32, %c0_i32_0 : i32, i32
  }
  func.func @transform_5(%arg0: i32) -> (i32, i32, i32) {
    %c0_i32 = arith.constant 0 : i32
    %c0_i32_0 = arith.constant 0 : i32
    %c0_i32_1 = arith.constant 0 : i32
    return %c0_i32, %arg0, %c0_i32_0 : i32, i32, i32
  }
}

</mosaic_0001>

<llo_original>
// kernel: tpu_custom_call.1
$region0: #{tpu_custom_call.1}
  #allocation0 [shape = 'u32[]', space=smem, size = 0x4, offset = 0x4, fixed_abs, tag = 'smem constant byte address 0x4 - core index']
  #allocation1 [shape = 'u32[72,128]{1,0:T(1,128)}', space=vmem, size = 0x9000, scoped, tag = 'internal scratch']
  %s0 = inlined_call_operand.hbm [shape: f32[2,16,32], index: 0, kind: input, shape index: {}]
  %s1 = inlined_call_operand.hbm [shape: f32[1,32], index: 1, kind: input, shape index: {}]
  %s2 = inlined_call_operand.vmem [shape: f32[1,32], index: 2, kind: input, shape index: {}]
  %s3 = inlined_call_operand.vmem [shape: f32[1,32], index: 3, kind: input, shape index: {}]
  %s4 = inlined_call_operand.vmem [shape: f32[1,32], index: 4, kind: input, shape index: {}]
  %s5 = inlined_call_operand.hbm [shape: f32[2,16,32], index: 5, kind: output, shape index: {}]
  %s6 = sld [smem:[#allocation0]]
  $region61: #{tpu_custom_call.1} parent=0
    _
  %s8 = ssub.s32 1, %s6
  %s9 = scalar_select 0, %s8, %s6
  $region1: #{tpu_custom_call.1} parent=0
    #allocation2 [shape = 'u8[16384]{0}', space=vmem, size = 0x4000, scoped, tag = 'input window, operand 0']
    #allocation3 [shape = 's32[2]{0}', space=sflag, size = 0x8, scoped, tag = 'scoped memory for tpu_custom_call.1']
    #allocation4 [shape = 's32[2]{0}', space=sflag, size = 0x8, scoped, tag = 'scoped memory for tpu_custom_call.1']
    #allocation5 [shape = 'u8[512]{0}', space=vmem, size = 0x400, scoped, tag = 'input window, operand 1, single buffered']
    #allocation6 [shape = 's32[1]{0}', space=sflag, size = 0x4, scoped, tag = 'scoped memory for tpu_custom_call.1']
    #allocation7 [shape = 'u8[16384]{0}', space=vmem, size = 0x4000, scoped, tag = 'output window, operand 0']
    %10 = vsyncpa [#allocation3], 0
    %s11 = scalar_lea.sflag [#allocation3], 1
    %12 = vsyncpa %s11, 0
    %13 = vsyncpa [#allocation6], 0
    %14 = vsyncpa [#allocation4], 0
    %s15 = scalar_lea.sflag [#allocation4], 1
    %16 = vsyncpa %s15, 0
    loop: start=0, step=1, limit=4
    $region2: #{tpu_custom_call.1} parent=1 // loop_pre_header
      _
    $region3: #{tpu_custom_call.1} parent=1 // loop_header
      %s18 = sphi 0, %s22
      %p19 = scmp.ge.s32.totalorder %s18, 4
      %s28 = sphi 0, %s30
      %s31 = sphi 0, %s28
      %s32 = sphi 0, %s31
      %s48 = sphi 0, %s32
      %s52 = sphi 0, %s52
      %s54 = sphi 0, %s52
      %s55 = sphi 0, %s54
      %s69 = sphi 0, %s55
      %s73 = sphi 0, %s73
      %s75 = sphi 0, %s73
      %s76 = sphi 0, %s75
      %s90 = sphi 0, %s76
      %s94 = sphi 0, %s94
      %s96 = sphi 0, %s94
      %s97 = sphi 0, %s96
      %s111 = sphi 0, %s97
      %s115 = sphi 0, %s115
      %s117 = sphi 0, %s115
      %s118 = sphi 0, %s117
      %s132 = sphi 0, %s118
      %s138 = sphi 0, %s140
      %s141 = sphi 0, %s138
      %s142 = sphi 0, %s141
      %s158 = sphi 0, %s142
    $region4: #{tpu_custom_call.1} parent=1 // loop_header_branch
      %21 = sbr.rel (%p19) target = $region8
    $region5: #{tpu_custom_call.1} parent=1 // loop_body
      %s23 = ssub.s32 %s18, 1
      %s24 = ssub.s32 %s18, 2
      %s25 = sadd.s32 %s18, 1
      %s26 = ssub.s32 %s18, %s25
      %p27 = scmp.eq.s32.totalorder %s26, 0
      %s29 = sadd.s32 %s28, 1
      %s30 = scalar_select %p27, %s28, %s29
      %p33 = pneg %p27
      %p34 = scmp.eq.s32.totalorder %s18, 1
      %p35 = por %p33, %p34
      %p36 = scmp.ne.s32.totalorder %s28, %s31
      %p37 = scmp.eq.s32.totalorder %s18, 0
      %p38 = por %p36, %p37
      %p39 = scmp.ne.s32.totalorder %s28, %s31
      %p40 = scmp.eq.s32.totalorder %s23, 1
      %p41 = por %p39, %p40
      %p42 = scmp.ne.s32.totalorder %s31, %s32
      %p43 = scmp.eq.s32.totalorder %s23, 0
      %p44 = por %p42, %p43
      %p45 = scmp.ne.s32.totalorder %s31, %s32
      %p46 = scmp.eq.s32.totalorder %s24, 1
      %p47 = por %p45, %p46
      %p49 = scmp.ne.s32.totalorder %s32, %s48
      %p50 = scmp.eq.s32.totalorder %s24, 0
      %p51 = por %p49, %p50
      %s53 = sadd.s32 %s52, 1
      %p56 = scmp.eq.s32.totalorder %s18, 1
      %p57 = scmp.ne.s32.totalorder %s52, %s54
      %p58 = scmp.eq.s32.totalorder %s18, 0
      %p59 = por %p57, %p58
      %p60 = scmp.ne.s32.totalorder %s52, %s54
      %p61 = scmp.eq.s32.totalorder %s23, 1
      %p62 = por %p60, %p61
      %p63 = scmp.ne.s32.totalorder %s54, %s55
      %p64 = scmp.eq.s32.totalorder %s23, 0
      %p65 = por %p63, %p64
      %p66 = scmp.ne.s32.totalorder %s54, %s55
      %p67 = scmp.eq.s32.totalorder %s24, 1
      %p68 = por %p66, %p67
      %p70 = scmp.ne.s32.totalorder %s55, %s69
      %p71 = scmp.eq.s32.totalorder %s24, 0
      %p72 = por %p70, %p71
      %s74 = sadd.s32 %s73, 1
      %p77 = scmp.eq.s32.totalorder %s18, 1
      %p78 = scmp.ne.s32.totalorder %s73, %s75
      %p79 = scmp.eq.s32.totalorder %s18, 0
      %p80 = por %p78, %p79
      %p81 = scmp.ne.s32.totalorder %s73, %s75
      %p82 = scmp.eq.s32.totalorder %s23, 1
      %p83 = por %p81, %p82
      %p84 = scmp.ne.s32.totalorder %s75, %s76
      %p85 = scmp.eq.s32.totalorder %s23, 0
      %p86 = por %p84, %p85
      %p87 = scmp.ne.s32.totalorder %s75, %s76
      %p88 = scmp.eq.s32.totalorder %s24, 1
      %p89 = por %p87, %p88
      %p91 = scmp.ne.s32.totalorder %s76, %s90
      %p92 = scmp.eq.s32.totalorder %s24, 0
      %p93 = por %p91, %p92
      %s95 = sadd.s32 %s94, 1
      %p98 = scmp.eq.s32.totalorder %s18, 1
      %p99 = scmp.ne.s32.totalorder %s94, %s96
      %p100 = scmp.eq.s32.totalorder %s18, 0
      %p101 = por %p99, %p100
      %p102 = scmp.ne.s32.totalorder %s94, %s96
      %p103 = scmp.eq.s32.totalorder %s23, 1
      %p104 = por %p102, %p103
      %p105 = scmp.ne.s32.totalorder %s96, %s97
      %p106 = scmp.eq.s32.totalorder %s23, 0
      %p107 = por %p105, %p106
      %p108 = scmp.ne.s32.totalorder %s96, %s97
      %p109 = scmp.eq.s32.totalorder %s24, 1
      %p110 = por %p108, %p109
      %p112 = scmp.ne.s32.totalorder %s97, %s111
      %p113 = scmp.eq.s32.totalorder %s24, 0
      %p114 = por %p112, %p113
      %s116 = sadd.s32 %s115, 1
      %p119 = scmp.eq.s32.totalorder %s18, 1
      %p120 = scmp.ne.s32.totalorder %s115, %s117
      %p121 = scmp.eq.s32.totalorder %s18, 0
      %p122 = por %p120, %p121
      %p123 = scmp.ne.s32.totalorder %s115, %s117
      %p124 = scmp.eq.s32.totalorder %s23, 1
      %p125 = por %p123, %p124
      %p126 = scmp.ne.s32.totalorder %s117, %s118
      %p127 = scmp.eq.s32.totalorder %s23, 0
      %p128 = por %p126, %p127
      %p129 = scmp.ne.s32.totalorder %s117, %s118
      %p130 = scmp.eq.s32.totalorder %s24, 1
      %p131 = por %p129, %p130
      %p133 = scmp.ne.s32.totalorder %s118, %s132
      %p134 = scmp.eq.s32.totalorder %s24, 0
      %p135 = por %p133, %p134
      %s136 = ssub.s32 %s18, %s25
      %p137 = scmp.eq.s32.totalorder %s136, 0
      %s139 = sadd.s32 %s138, 1
      %s140 = scalar_select %p137, %s138, %s139
      %p143 = pneg %p137
      %p144 = scmp.eq.s32.totalorder %s18, 1
      %p145 = por %p143, %p144
      %p146 = scmp.ne.s32.totalorder %s138, %s141
      %p147 = scmp.eq.s32.totalorder %s18, 0
      %p148 = por %p146, %p147
      %p149 = scmp.ne.s32.totalorder %s138, %s141
      %p150 = scmp.eq.s32.totalorder %s23, 1
      %p151 = por %p149, %p150
      %p152 = scmp.ne.s32.totalorder %s141, %s142
      %p153 = scmp.eq.s32.totalorder %s23, 0
      %p154 = por %p152, %p153
      %p155 = scmp.ne.s32.totalorder %s141, %s142
      %p156 = scmp.eq.s32.totalorder %s24, 1
      %p157 = por %p155, %p156
      %p159 = scmp.ne.s32.totalorder %s142, %s158
      %p160 = scmp.eq.s32.totalorder %s24, 0
      %p161 = por %p159, %p160
      %p162 = scmp.le.s32.totalorder 1, %s18
      %p163 = scmp.lt.s32.totalorder %s18, 3
      %p164 = pnand %p162, %p163
      %p165 = pneg %p164
      // Predicated region
      $region9: #{tpu_custom_call.1} parent=5 // pred_check
        _
      $region10: #{tpu_custom_call.1} parent=5 // pred_check_branch
        %167 = sbr.rel (%p164) target = $region12
      $region11: #{tpu_custom_call.1} parent=5 // pred_region
        %s168 = ssub.s32 %s18, 1
        // Predicated region
        $region13: #{tpu_custom_call.1} parent=11 // pred_check
          %p169 = pneg %p65
        $region14: #{tpu_custom_call.1} parent=11 // pred_check_branch
          %171 = sbr.rel (%p169) target = $region16
        $region15: #{tpu_custom_call.1} parent=11 // pred_region
          %173 = vsyncadd [#allocation6], 0
          %s175 = sshll.u32 %s1, 4
          %s176 = int_to_ptr.hbm [resolvable:$true] %s175
          %s177 = sshll.u32 [#allocation5], 4
          %s178 = int_to_ptr.vmem [resolvable:$true] %s177
          %180 = dma.hbm_to_vmem [thread:$0]  %s176, 16, %s178, [#allocation6]
        $region16: #{tpu_custom_call.1} parent=11 // pred_fallthru
          _
        // Predicated region
        $region17: #{tpu_custom_call.1} parent=11 // pred_check
          %p181 = pneg %p86
        $region18: #{tpu_custom_call.1} parent=11 // pred_check_branch
          %183 = sbr.rel (%p181) target = $region20
        $region19: #{tpu_custom_call.1} parent=11 // pred_region
          _
        $region20: #{tpu_custom_call.1} parent=11 // pred_fallthru
          _
        // Predicated region
        $region21: #{tpu_custom_call.1} parent=11 // pred_check
          %p184 = pneg %p107
        $region22: #{tpu_custom_call.1} parent=11 // pred_check_branch
          %186 = sbr.rel (%p184) target = $region24
        $region23: #{tpu_custom_call.1} parent=11 // pred_region
          _
        $region24: #{tpu_custom_call.1} parent=11 // pred_fallthru
          _
        // Predicated region
        $region25: #{tpu_custom_call.1} parent=11 // pred_check
          %p187 = pneg %p128
        $region26: #{tpu_custom_call.1} parent=11 // pred_check_branch
          %189 = sbr.rel (%p187) target = $region28
        $region27: #{tpu_custom_call.1} parent=11 // pred_region
          _
        $region28: #{tpu_custom_call.1} parent=11 // pred_fallthru
          _
      $region12: #{tpu_custom_call.1} parent=5 // pred_fallthru
        _
      %p190 = scmp.lt.s32.totalorder %s18, 2
      // Predicated region
      $region29: #{tpu_custom_call.1} parent=5 // pred_check
        %p191 = pneg %p190
      $region30: #{tpu_custom_call.1} parent=5 // pred_check_branch
        %193 = sbr.rel (%p191) target = $region32
      $region31: #{tpu_custom_call.1} parent=5 // pred_region
        // Predicated region
        $region33: #{tpu_custom_call.1} parent=31 // pred_check
          %p194 = pneg %p38
        $region34: #{tpu_custom_call.1} parent=31 // pred_check_branch
          %196 = sbr.rel (%p194) target = $region36
        $region35: #{tpu_custom_call.1} parent=31 // pred_region
          %s197 = sand.u32 %s28, 1
          %s198 = scalar_lea.sflag [#allocation3], %s197
          %s199 = sand.u32 %s28, 1
          %s200 = smul.addr %s199, 16
          %s201 = scalar_lea.vmem [#allocation2], %s200
          %203 = vsyncadd %s198, 0
          %s204 = smul.addr %s18, 8
          %s205 = scalar_lea.hbm %s0, %s204
          %s206 = sshll.u32 %s205, 4
          %s207 = int_to_ptr.hbm [resolvable:$true] %s206
          %s208 = sshll.u32 %s201, 4
          %s209 = int_to_ptr.vmem [resolvable:$true] %s208
          %214 = dma.hbm_to_vmem [thread:$0]  %s207, 256, %s209, %s198, 256, 128, 8
        $region36: #{tpu_custom_call.1} parent=31 // pred_fallthru
          _
      $region32: #{tpu_custom_call.1} parent=5 // pred_fallthru
        _
      %p215 = scmp.le.s32.totalorder 1, %s18
      %p216 = scmp.lt.s32.totalorder %s18, 3
      %p217 = pnand %p215, %p216
      %p218 = pneg %p217
      // Predicated region
      $region37: #{tpu_custom_call.1} parent=5 // pred_check
        _
      $region38: #{tpu_custom_call.1} parent=5 // pred_check_branch
        %220 = sbr.rel (%p217) target = $region40
      $region39: #{tpu_custom_call.1} parent=5 // pred_region
        %s221 = ssub.s32 %s18, 1
        %s222 = sand.u32 %s31, 1
        %s223 = scalar_lea.sflag [#allocation3], %s222
        %s224 = sand.u32 %s31, 1
        %s225 = smul.addr %s224, 16
        %s226 = scalar_lea.vmem [#allocation2], %s225
        // Predicated region
        $region41: #{tpu_custom_call.1} parent=39 // pred_check
          %p227 = pneg %p44
        $region42: #{tpu_custom_call.1} parent=39 // pred_check_branch
          %229 = sbr.rel (%p227) target = $region44
        $region43: #{tpu_custom_call.1} parent=39 // pred_region
          %231 = dma.done %s223, 256
        $region44: #{tpu_custom_call.1} parent=39 // pred_fallthru
          _
        // Predicated region
        $region45: #{tpu_custom_call.1} parent=39 // pred_check
          %p232 = pneg %p65
        $region46: #{tpu_custom_call.1} parent=39 // pred_check_branch
          %234 = sbr.rel (%p232) target = $region48
        $region47: #{tpu_custom_call.1} parent=39 // pred_region
          %236 = dma.done [#allocation6], 16
        $region48: #{tpu_custom_call.1} parent=39 // pred_fallthru
          _
        %s237 = sand.u32 %s31, 1
        %s238 = scalar_lea.sflag [#allocation3], %s237
        %s239 = sand.u32 %s31, 1
        %s240 = smul.addr %s239, 16
        %s241 = scalar_lea.vmem [#allocation2], %s240
        %p242 = pneg %p44
        %p243 = pneg %p41
        %p244 = pneg %p65
        %p245 = pneg %p62
        %p246 = pneg %p86
        %p247 = pneg %p83
        %p248 = pneg %p107
        %p249 = pneg %p104
        %p250 = pneg %p128
        %p251 = pneg %p125
        %p252 = pneg %p154
        %p253 = pneg %p151
        %s254 = sand.u32 %s141, 1
        %s255 = scalar_lea.sflag [#allocation4], %s254
        %s256 = sand.u32 %s141, 1
        %s257 = smul.addr %s256, 16
        %s258 = scalar_lea.vmem [#allocation7], %s257
        %v259 = vld [vmem:[%s226] sm:$0xff]
        %v260 = vld [vmem:[#allocation5] sm:$0x1]
        %v261 = vld [vmem:[%s2] sm:$0x1]
        %vm262 = vcmask 261120
        %v263 = vsel %vm262, %v259, 0.0
        %264 = vadd.xlane.f32.xlu0 %v263
        %v265 = vpop.xlane.xlu0 %264
        %v266 = vrcp.pop 32.0
        %v267 = vmul.f32 32.0, %v266
        %v268 = vsub.f32 1.0, %v267
        %v269 = vmul.f32 %v266, %v268
        %v270 = vadd.f32 %v266, %v269
        %vm271 = vweird.f32 %v266
        %v272 = vsel %vm271, %v266, %v270
        %v273 = vmul.f32 %v265, %v272
        %v274 = vmul.f32 %v259, %v259
        %v275 = vsel %vm262, %v274, 0.0
        %276 = vadd.xlane.f32.xlu0 %v275
        %v277 = vpop.xlane.xlu0 %276
        %v278 = vmul.f32 %v277, %v272
        %v279 = vmul.f32 %v273, %v273
        %v280 = vsub.f32 %v278, %v279
        %v281 = vmax.f32 %v280, 0.0
        %v282 = vadd.f32 %v281, 1e-05
        %v283 = vrsqrt.pop %v282
        %v284 = vmul.f32 %v283, %v282
        %v285 = vmul.f32 %v284, %v283
        %v286 = vmul.f32 0.5, %v285
        %v287 = vsub.f32 1.5, %v286
        %v288 = vmul.f32 %v283, %v287
        %vm289 = vweird.f32 %v282
        %vm290 = vweird.f32 %v283
        %vm291 = vmor %vm289, %vm290
        %v292 = vsel %vm291, %v283, %v288
        %v293 = vsub.f32 %v259, %v273
        %v295 = vperm.slane %v260, 0
        %v297 = vmul.f32 %v292, %v295
        %v298 = vmul.f32 %v293, %v297
        %v300 = vperm.slane %v261, 0
        %v302 = vadd.f32 %v298, %v300
        %303 = vst.msk [vmem:[%s258] sm:$0xff] %vm262, %v302
        %s304 = scalar_lea.vmem %s226, 8 [#allocation2]
        %v305 = vld [vmem:[%s304] sm:$0xff]
        %v306 = vld [vmem:[%s3] sm:$0x1]
        %v307 = vld [vmem:[%s4] sm:$0x1]
        %v308 = vsel %vm262, %v305, 0.0
        %309 = vadd.xlane.f32.xlu0 %v308
        %v310 = vpop.xlane.xlu0 %309
        %v311 = vmul.f32 %v310, %v272
        %v312 = vmul.f32 %v305, %v305
        %v313 = vsel %vm262, %v312, 0.0
        %314 = vadd.xlane.f32.xlu0 %v313
        %v315 = vpop.xlane.xlu0 %314
        %v316 = vmul.f32 %v315, %v272
        %v317 = vmul.f32 %v311, %v311
        %v318 = vsub.f32 %v316, %v317
        %v319 = vmax.f32 %v318, 0.0
        %v320 = vadd.f32 %v319, 1e-05
        %v321 = vrsqrt.pop %v320
        %v322 = vmul.f32 %v321, %v320
        %v323 = vmul.f32 %v322, %v321
        %v324 = vmul.f32 0.5, %v323
        %v325 = vsub.f32 1.5, %v324
        %v326 = vmul.f32 %v321, %v325
        %vm327 = vweird.f32 %v320
        %vm328 = vweird.f32 %v321
        %vm329 = vmor %vm327, %vm328
        %v330 = vsel %vm329, %v321, %v326
        %v331 = vsub.f32 %v305, %v311
        %v333 = vperm.slane %v306, 0
        %v335 = vmul.f32 %v330, %v333
        %v336 = vmul.f32 %v331, %v335
        %v338 = vperm.slane %v307, 0
        %v340 = vadd.f32 %v336, %v338
        %s341 = scalar_lea.vmem %s258, 8 [#allocation7]
        %342 = vst.msk [vmem:[%s341] sm:$0xff] %vm262, %v340
        %s343 = sand.u32 %s141, 1
        %s344 = scalar_lea.sflag [#allocation4], %s343
        %s345 = sand.u32 %s141, 1
        %s346 = smul.addr %s345, 16
        %s347 = scalar_lea.vmem [#allocation7], %s346
        // Predicated region
        $region49: #{tpu_custom_call.1} parent=39 // pred_check
          %p348 = pneg %p151
        $region50: #{tpu_custom_call.1} parent=39 // pred_check_branch
          %350 = sbr.rel (%p348) target = $region52
        $region51: #{tpu_custom_call.1} parent=39 // pred_region
          %352 = vsyncadd %s344, 0
          %s353 = smul.addr %s23, 8
          %s354 = scalar_lea.hbm %s5, %s353
          %s355 = sshll.u32 %s347, 4
          %s356 = int_to_ptr.vmem [resolvable:$true] %s355
          %s357 = sshll.u32 %s354, 4
          %s358 = int_to_ptr.hbm [resolvable:$true] %s357
          %363 = dma.vmem_to_hbm [thread:$0]  %s356, 256, %s358, %s344, 128, 256, 8
        $region52: #{tpu_custom_call.1} parent=39 // pred_fallthru
          _
      $region40: #{tpu_custom_call.1} parent=5 // pred_fallthru
        _
      %p364 = scmp.le.s32.totalorder 2, %s18
      // Predicated region
      $region53: #{tpu_custom_call.1} parent=5 // pred_check
        %p365 = pneg %p364
      $region54: #{tpu_custom_call.1} parent=5 // pred_check_branch
        %367 = sbr.rel (%p365) target = $region56
      $region55: #{tpu_custom_call.1} parent=5 // pred_region
        %s368 = ssub.s32 %s18, 2
        // Predicated region
        $region57: #{tpu_custom_call.1} parent=55 // pred_check
          %p369 = pneg %p157
        $region58: #{tpu_custom_call.1} parent=55 // pred_check_branch
          %371 = sbr.rel (%p369) target = $region60
        $region59: #{tpu_custom_call.1} parent=55 // pred_region
          %s372 = sand.u32 %s142, 1
          %s373 = scalar_lea.sflag [#allocation4], %s372
          %s374 = sand.u32 %s142, 1
          %s375 = smul.addr %s374, 16
          %s376 = scalar_lea.vmem [#allocation7], %s375
          %378 = dma.done %s373, 256
        $region60: #{tpu_custom_call.1} parent=55 // pred_fallthru
          _
      $region56: #{tpu_custom_call.1} parent=5 // pred_fallthru
        _
    $region6: #{tpu_custom_call.1} parent=1 // loop_footer
      %s22 = sadd.s32 1, %s18
    $region7: #{tpu_custom_call.1} parent=1 // loop_footer_branch
      %17 = sbr.rel target = $region3
    $region8: #{tpu_custom_call.1} parent=1 // loop_exit
      _
    %379 = vsyncpa [#allocation3], 1
    %s380 = scalar_lea.sflag [#allocation3], 1
    %381 = vsyncpa %s380, 1
    %382 = vsyncpa [#allocation6], 1
    %383 = vsyncpa [#allocation4], 1
    %s384 = scalar_lea.sflag [#allocation4], 1
    %385 = vsyncpa %s384, 1

</llo_original>
